<compile_context>
chip_gen: v7x
topology: tpu7x:2x2x1
jax: 0.10.0
libtpu: 0.0.40
codegen_flags: <defaults>
</compile_context>

<pallas_src>
import functools

import jax
import jax.numpy as jnp
from jax import lax
from jax.experimental import pallas as pl
from jax.experimental.pallas import tpu as pltpu


_LANE = 128                        # TPU lane width
_HALO = 128                        # halo block width (lane dim), multiple of 128
_TILE_L_MAX = 32768                # upper bound on the output-frame tile
_VMEM_BUDGET = 24 * 1024 * 1024    # per-step working-set target (all generations)
_VMEM_LIMIT = 32 * 1024 * 1024     # scoped VMEM limit; safe on v5e/v6e/v7x


def _round_up(a, b):
    return ((a + b - 1) // b) * b


def _encoder_kernel(w_ref, cur_ref, nxt_ref, o_ref, *,
                    num_taps, win_shift, tile_l, precision):
    """One (C, tile_l) output tile of conv1d(stride=win_shift) + ReLU.

    w_ref:   (C, R*win_shift)          resident, lane-dense 2-D weights
    cur_ref: (1, win_shift, tile_l)    polyphase input, current L-tile
    nxt_ref: (1, win_shift, _HALO)     first _HALO columns of the next L-tile
    o_ref:   (1, C, tile_l)            lane-dense output tile
    """
    cur = cur_ref[0]                                       # (win_shift, tile_l)

    if num_taps == 1:
        # win_size <= win_shift: single tap, no halo needed.
        acc = jnp.dot(w_ref[...], cur,
                      preferred_element_type=jnp.float32, precision=precision)
    elif win_shift % 8 == 0:
        # Fused path: stack the R lane-shifted windows along sublanes so the
        # whole window is a single K = R*win_shift matmul (one MXU push/pop).
        nxt = nxt_ref[0]                                   # (win_shift, _HALO)
        ext = jnp.concatenate([cur, nxt], axis=-1)         # (win_shift, tile_l+_HALO)
        rhs = jnp.concatenate(
            [ext[:, r:r + tile_l] for r in range(num_taps)], axis=0)
        acc = jnp.dot(w_ref[...], rhs,
                      preferred_element_type=jnp.float32, precision=precision)
    else:
        # Fallback for sublane-unaligned win_shift: per-tap accumulation.
        # Tap 0 reads `cur` directly (no full-tile copy).
        acc = jnp.dot(w_ref[:, :win_shift], cur,
                      preferred_element_type=jnp.float32, precision=precision)
        nxt = nxt_ref[0]
        ext = jnp.concatenate([cur, nxt], axis=-1)
        for r in range(1, num_taps):
            acc = acc + jnp.dot(
                w_ref[:, r * win_shift:(r + 1) * win_shift],
                ext[:, r:r + tile_l],
                preferred_element_type=jnp.float32, precision=precision)

    o_ref[0] = jnp.maximum(acc, 0.0).astype(o_ref.dtype)


def encoder_forward(x, weight, win_size, win_shift, *,
                    compute_dtype=None, out_dtype=None, max_tile_l=_TILE_L_MAX):
    """Pallas TPU equivalent of Encoder.forward (Conv1d(1->C, bias=False) + ReLU).

    x:       (B, T)            input signal
    weight:  (C, 1, win_size)  nn.Conv1d weight layout
    returns: (B, C, L), L = (T - win_size)//win_shift + 1

    compute_dtype: matmul operand dtype. Default = x.dtype (f32, HIGHEST
        precision -> matches the reference). bfloat16 halves input HBM reads
        while keeping f32 accumulation.
    out_dtype: output dtype (default x.dtype). bfloat16 halves the dominant
        output write traffic if downstream accepts it.
    """
    B, T = x.shape
    C = weight.shape[0]
    assert T >= win_size, "input shorter than the analysis window"
    L = (T - win_size) // win_shift + 1
    R = -(-win_size // win_shift)                    # ceil(win_size/win_shift)
    assert R - 1 <= _HALO, "halo wider than one 128-lane block is unsupported"

    compute_dtype = jnp.dtype(x.dtype if compute_dtype is None else compute_dtype)
    out_dtype = jnp.dtype(x.dtype if out_dtype is None else out_dtype)
    precision = lax.Precision.HIGHEST if compute_dtype == jnp.float32 else None
    in_bytes = compute_dtype.itemsize
    out_bytes = out_dtype.itemsize

    # ---- tile size from a VMEM budget (output dominates for large C) --------
    per_col = (2 * C * out_bytes                     # double-buffered out blocks
               + 4 * C                               # f32 matmul result pre-cast
               + (3 + R) * win_shift * in_bytes)     # cur x2 + ext + stacked RHS
    tile_l = (_VMEM_BUDGET // per_col) // _LANE * _LANE
    tile_l = max(_LANE, min(tile_l, max_tile_l, _round_up(L, _LANE)))

    nt = pl.cdiv(L, tile_l)
    l_pad = nt * tile_l                              # frame count in whole blocks
    s_pad = l_pad + _HALO                            # polyphase columns incl. halo
    t_need = s_pad * win_shift

    # ---- polyphase (strided de-interleave) view of the input ----------------
    # xp[b, j, s] = x[b, s*win_shift + j]; fused pad+cast+reshape+transpose.
    x_use = x[:, :min(T, t_need)]
    if t_need > x_use.shape[1]:
        x_use = jnp.pad(x_use, ((0, 0), (0, t_need - x_use.shape[1])))
    xp = (x_use.astype(compute_dtype)
               .reshape(B, s_pad, win_shift)
               .transpose(0, 2, 1))                  # (B, win_shift, s_pad)

    # ---- weights: 2-D lane-dense (C, R*win_shift), zero-padded extra taps ----
    w2 = weight.reshape(C, win_size).astype(compute_dtype)
    w2 = jnp.pad(w2, ((0, 0), (0, R * win_shift - win_size)))    # (C, R*win_shift)

    kernel = functools.partial(_encoder_kernel, num_taps=R, win_shift=win_shift,
                               tile_l=tile_l, precision=precision)
    halo_step = tile_l // _HALO

    out = pl.pallas_call(
        kernel,
        out_shape=jax.ShapeDtypeStruct((B, C, L), out_dtype),
        grid=(B, nt),
        in_specs=[
            # resident weights (single block)
            pl.BlockSpec((C, R * win_shift), lambda b, i: (0, 0)),
            # current polyphase tile
            pl.BlockSpec((1, win_shift, tile_l), lambda b, i: (b, 0, i)),
            # halo: first _HALO columns of the next tile (in bounds by padding)
            pl.BlockSpec((1, win_shift, _HALO),
                         lambda b, i: (b, 0, (i + 1) * halo_step)),
        ],
        # Output written directly as (B, C, L); last tile is a masked partial
        # block, so no post-kernel trim copy is needed.
        out_specs=pl.BlockSpec((1, C, tile_l), lambda b, i: (b, 0, i)),
        compiler_params=pltpu.CompilerParams(
            dimension_semantics=("parallel", "parallel"),
            vmem_limit_bytes=_VMEM_LIMIT),
    )(w2, xp, xp)

    return out


def encoder_reference(x, weight, win_size, win_shift):
    """Pure-JAX reference of the PyTorch forward for verification."""
    B, T = x.shape
    C = weight.shape[0]
    L = (T - win_size) // win_shift + 1
    starts = jnp.arange(L) * win_shift
    idx = starts[:, None] + jnp.arange(win_size)[None, :]
    frames = x[:, idx].astype(jnp.float32)                       # (B, L, win_size)
    out = jnp.einsum("blk,ck->bcl", frames,
                     weight.reshape(C, win_size).astype(jnp.float32),
                     precision=lax.Precision.HIGHEST)
    return jnp.maximum(out, 0.0)


if __name__ == "__main__":
    key = jax.random.PRNGKey(0)

    # (win_size, win_shift, C, B, T, compute_dtype, max_tile_l, atol)
    cases = [
        (16, 8, 32, 2, 256, jnp.float32, _TILE_L_MAX, 1e-4),   # partial masked out tile
        (10, 4, 16, 2, 70, jnp.float32, _TILE_L_MAX, 1e-4),    # R=3, unaligned-shift path
        (8, 8, 8, 2, 64, jnp.float32, _TILE_L_MAX, 1e-4),      # single-tap path
        (16, 8, 16, 2, 3216, jnp.float32, 128, 1e-4),          # multi-tile + halo path
        (16, 8, 32, 2, 256, jnp.bfloat16, _TILE_L_MAX, 5e-2),  # bf16-input fast path
    ]

    ok = True
    for (ws, sh, C, B, T, cdt, mtl, atol) in cases:
        key, kx, kw = jax.random.split(key, 3)
        x = jax.random.normal(kx, (B, T), dtype=jnp.float32)
        w = jax.random.normal(kw, (C, 1, ws), dtype=jnp.float32) * 0.1

        fwd = jax.jit(functools.partial(
            encoder_forward, win_size=ws, win_shift=sh,
            compute_dtype=cdt, max_tile_l=mtl))
        y = jax.block_until_ready(fwd(x, w))
        y_ref = encoder_reference(x, w, ws, sh)

        L = (T - ws) // sh + 1
        assert y.shape == (B, C, L), (y.shape, (B, C, L))
        err = float(jnp.max(jnp.abs(y.astype(jnp.float32) - y_ref)))
        if err > atol:
            ok = False
            print(f"MISMATCH (win={ws}, shift={sh}, dtype={jnp.dtype(cdt).name}): "
                  f"max abs err = {err}")

    if ok:
        print("KERNEL_OK")
</pallas_src>

<mosaic_0001>
module attributes {stable_mosaic.version = 11 : i64} {
  func.func @_encoder_kernel(%arg0: i32, %arg1: i32, %arg2: memref<32x16xf32, #tpu.memory_space<vmem>>, %arg3: memref<1x8x128xf32, #tpu.memory_space<vmem>>, %arg4: memref<1x8x128xf32, #tpu.memory_space<vmem>>, %arg5: memref<1x32x128xf32, #tpu.memory_space<vmem>>) attributes {dimension_semantics = [#tpu.dimension_semantics<parallel>, #tpu.dimension_semantics<parallel>], iteration_bounds = array<i64: 2, 1>, scalar_prefetch = 0 : i64, scratch_operands = 0 : i64, tpu.core_type = #tpu.core_type<tc>, window_params = [{pipeline_mode = #tpu.pipeline_mode<synchronous>, transform_indices = @transform_0, window_bounds = array<i64: 32, 16>}, {transform_indices = @transform_1, window_bounds = array<i64: 1, 8, 128>}, {transform_indices = @transform_2, window_bounds = array<i64: 1, 8, 128>}, {transform_indices = @transform_3, window_bounds = array<i64: 1, 32, 128>}]} {
    %c0 = arith.constant 0 : index
    %c0_0 = arith.constant 0 : index
    %c0_1 = arith.constant 0 : index
    %0 = vector.load %arg3[%c0, %c0_0, %c0_1] : memref<1x8x128xf32, #tpu.memory_space<vmem>>, vector<1x8x128xf32>
    %1 = vector.shape_cast %0 : vector<1x8x128xf32> to vector<8x128xf32>
    %c0_2 = arith.constant 0 : index
    %c0_3 = arith.constant 0 : index
    %c0_4 = arith.constant 0 : index
    %2 = vector.load %arg4[%c0_2, %c0_3, %c0_4] : memref<1x8x128xf32, #tpu.memory_space<vmem>>, vector<1x8x128xf32>
    %3 = vector.shape_cast %2 : vector<1x8x128xf32> to vector<8x128xf32>
    %4 = tpu.concatenate %1, %3 in 1 : vector<8x128xf32>, vector<8x128xf32> -> vector<8x256xf32>
    %5 = vector.extract_strided_slice %4 {offsets = [0, 0], sizes = [8, 128], strides = [1, 1]} : vector<8x256xf32> to vector<8x128xf32>
    %6 = vector.extract_strided_slice %4 {offsets = [0, 1], sizes = [8, 128], strides = [1, 1]} : vector<8x256xf32> to vector<8x128xf32>
    %7 = tpu.concatenate %5, %6 in 0 : vector<8x128xf32>, vector<8x128xf32> -> vector<16x128xf32>
    %c0_5 = arith.constant 0 : index
    %c0_6 = arith.constant 0 : index
    %8 = vector.load %arg2[%c0_5, %c0_6] : memref<32x16xf32, #tpu.memory_space<vmem>>, vector<32x16xf32>
    %cst = arith.constant dense<0.000000e+00> : vector<32x128xf32>
    %9 = tpu.matmul %8, %7, %cst {dimension_numbers = #tpu.dot_dimension_numbers<[1], [0], [0], [1], [0, 0, 1, 1], [], []>, precision = #tpu.contract_precision<fp32>} : vector<32x16xf32>, vector<16x128xf32>, vector<32x128xf32> -> vector<32x128xf32>
    %cst_7 = arith.constant 0.000000e+00 : f32
    %10 = vector.broadcast %cst_7 : f32 to vector<32x128xf32>
    %11 = arith.maximumf %9, %10 : vector<32x128xf32>
    %c0_8 = arith.constant 0 : index
    %c0_9 = arith.constant 0 : index
    %c0_10 = arith.constant 0 : index
    %12 = vector.load %arg5[%c0_8, %c0_9, %c0_10] : memref<1x32x128xf32, #tpu.memory_space<vmem>>, vector<1x32x128xf32>
    %13 = vector.shape_cast %12 : vector<1x32x128xf32> to vector<32x128xf32>
    %14 = vector.shape_cast %11 : vector<32x128xf32> to vector<1x32x128xf32>
    tpu.vector_store %arg5[%c0_8, %c0_9, %c0_10], %14 {strides = array<i32>} : memref<1x32x128xf32, #tpu.memory_space<vmem>>, vector<1x32x128xf32>,
    return
  }
  func.func @transform_0(%arg0: i32, %arg1: i32) -> (i32, i32) {
    %c0_i32 = arith.constant 0 : i32
    %c0_i32_0 = arith.constant 0 : i32
    %c0_i32_1 = arith.constant 0 : i32
    return %c0_i32, %c0_i32_0 : i32, i32
  }
  func.func @transform_1(%arg0: i32, %arg1: i32) -> (i32, i32, i32) {
    %c0_i32 = arith.constant 0 : i32
    %c0_i32_0 = arith.constant 0 : i32
    return %arg0, %c0_i32, %arg1 : i32, i32, i32
  }
  func.func @transform_2(%arg0: i32, %arg1: i32) -> (i32, i32, i32) {
    %c1_i32 = arith.constant 1 : i32
    %0 = arith.addi %arg1, %c1_i32 : i32
    %c1_i32_0 = arith.constant 1 : i32
    %1 = arith.muli %0, %c1_i32_0 : i32
    %c0_i32 = arith.constant 0 : i32
    %c0_i32_1 = arith.constant 0 : i32
    return %arg0, %c0_i32, %1 : i32, i32, i32
  }
  func.func @transform_3(%arg0: i32, %arg1: i32) -> (i32, i32, i32) {
    %c0_i32 = arith.constant 0 : i32
    %c0_i32_0 = arith.constant 0 : i32
    return %arg0, %c0_i32, %arg1 : i32, i32, i32
  }
}

</mosaic_0001>

<llo_original>
// kernel: encoder_forward.1
$region0: #{encoder_forward.1}
  #allocation0 [shape = 'u32[]', space=smem, size = 0x4, offset = 0x4, fixed_abs, tag = 'smem constant byte address 0x4 - core index']
  #allocation1 [shape = 'u32[144,128]{1,0:T(1,128)}', space=vmem, size = 0x12000, scoped, tag = 'internal scratch']
  %s0 = inlined_call_operand.vmem [shape: f32[32,16], index: 0, kind: input, shape index: {}]
  %s1 = inlined_call_operand.vmem [shape: f32[2,8,256], index: 1, kind: input, shape index: {}, may-alias: {1,2}]
  %s2 = inlined_call_operand.vmem [shape: f32[2,8,256], index: 2, kind: input, shape index: {}, may-alias: {1,2}]
  %s3 = inlined_call_operand.vmem [shape: f32[2,32,31], index: 3, kind: output, shape index: {}]
  %s4 = sld [smem:[#allocation0]]
  $region45: #{encoder_forward.1} parent=0
    _
  %s6 = ssub.s32 1, %s4
  %s7 = scalar_select 0, %s6, %s4
  loop: start=0, step=1, limit=4
  $region2: #{encoder_forward.1} parent=0 // loop_pre_header
    _
  $region3: #{encoder_forward.1} parent=0 // loop_header
    %s9 = sphi 0, %s13
    %p10 = scmp.ge.s32.totalorder %s9, 4
    %s16 = sphi 0, %s28
    %s17 = sphi 0, %s24
    %s18 = sphi 0, %s16
    %s19 = sphi 0, %s17
    %s20 = sphi 0, %s18
    %s21 = sphi 0, %s19
    %s29 = sphi 0, %s29
    %s31 = sphi 0, %s29
    %s32 = sphi 0, %s31
    %s46 = sphi 0, %s32
    %s54 = sphi 0, %s56
    %s57 = sphi 0, %s54
    %s58 = sphi 0, %s57
    %s74 = sphi 0, %s58
    %s84 = sphi 0, %s86
    %s87 = sphi 0, %s84
    %s88 = sphi 0, %s87
    %s104 = sphi 0, %s88
    %s112 = sphi 0, %s114
    %s115 = sphi 0, %s112
    %s116 = sphi 0, %s115
    %s132 = sphi 0, %s116
  $region4: #{encoder_forward.1} parent=0 // loop_header_branch
    %12 = sbr.rel (%p10) target = $region8
  $region5: #{encoder_forward.1} parent=0 // loop_body
    %s14 = ssub.s32 %s9, 1
    %s15 = ssub.s32 %s9, 2
    %s22 = sadd.s32 1, %s17
    %p23 = scmp.ge.s32.totalorder %s22, 1
    %s24 = scalar_select %p23, 0, %s22
    %s25 = sadd.s32 1, %s16
    %s26 = scalar_select %p23, %s25, %s16
    %p27 = scmp.ge.s32.totalorder %s26, 2
    %s28 = scalar_select %p27, 0, %s26
    %s30 = sadd.s32 %s29, 1
    %p33 = scmp.eq.s32.totalorder %s9, 1
    %p34 = scmp.ne.s32.totalorder %s29, %s31
    %p35 = scmp.eq.s32.totalorder %s9, 0
    %p36 = por %p34, %p35
    %p37 = scmp.ne.s32.totalorder %s29, %s31
    %p38 = scmp.eq.s32.totalorder %s14, 1
    %p39 = por %p37, %p38
    %p40 = scmp.ne.s32.totalorder %s31, %s32
    %p41 = scmp.eq.s32.totalorder %s14, 0
    %p42 = por %p40, %p41
    %p43 = scmp.ne.s32.totalorder %s31, %s32
    %p44 = scmp.eq.s32.totalorder %s15, 1
    %p45 = por %p43, %p44
    %p47 = scmp.ne.s32.totalorder %s32, %s46
    %p48 = scmp.eq.s32.totalorder %s15, 0
    %p49 = por %p47, %p48
    %s50 = ssub.s32 %s16, %s28
    %s51 = ssub.s32 %s17, %s24
    %s52 = sor.u32 %s50, %s51
    %p53 = scmp.eq.s32.totalorder %s52, 0
    %s55 = sadd.s32 %s54, 1
    %s56 = scalar_select %p53, %s54, %s55
    %p59 = pneg %p53
    %p60 = scmp.eq.s32.totalorder %s9, 1
    %p61 = por %p59, %p60
    %p62 = scmp.ne.s32.totalorder %s54, %s57
    %p63 = scmp.eq.s32.totalorder %s9, 0
    %p64 = por %p62, %p63
    %p65 = scmp.ne.s32.totalorder %s54, %s57
    %p66 = scmp.eq.s32.totalorder %s14, 1
    %p67 = por %p65, %p66
    %p68 = scmp.ne.s32.totalorder %s57, %s58
    %p69 = scmp.eq.s32.totalorder %s14, 0
    %p70 = por %p68, %p69
    %p71 = scmp.ne.s32.totalorder %s57, %s58
    %p72 = scmp.eq.s32.totalorder %s15, 1
    %p73 = por %p71, %p72
    %p75 = scmp.ne.s32.totalorder %s58, %s74
    %p76 = scmp.eq.s32.totalorder %s15, 0
    %p77 = por %p75, %p76
    %s78 = sadd.s32 %s17, 1
    %s79 = sadd.s32 %s24, 1
    %s80 = ssub.s32 %s16, %s28
    %s81 = ssub.s32 %s78, %s79
    %s82 = sor.u32 %s80, %s81
    %p83 = scmp.eq.s32.totalorder %s82, 0
    %s85 = sadd.s32 %s84, 1
    %s86 = scalar_select %p83, %s84, %s85
    %p89 = pneg %p83
    %p90 = scmp.eq.s32.totalorder %s9, 1
    %p91 = por %p89, %p90
    %p92 = scmp.ne.s32.totalorder %s84, %s87
    %p93 = scmp.eq.s32.totalorder %s9, 0
    %p94 = por %p92, %p93
    %p95 = scmp.ne.s32.totalorder %s84, %s87
    %p96 = scmp.eq.s32.totalorder %s14, 1
    %p97 = por %p95, %p96
    %p98 = scmp.ne.s32.totalorder %s87, %s88
    %p99 = scmp.eq.s32.totalorder %s14, 0
    %p100 = por %p98, %p99
    %p101 = scmp.ne.s32.totalorder %s87, %s88
    %p102 = scmp.eq.s32.totalorder %s15, 1
    %p103 = por %p101, %p102
    %p105 = scmp.ne.s32.totalorder %s88, %s104
    %p106 = scmp.eq.s32.totalorder %s15, 0
    %p107 = por %p105, %p106
    %s108 = ssub.s32 %s16, %s28
    %s109 = ssub.s32 %s17, %s24
    %s110 = sor.u32 %s108, %s109
    %p111 = scmp.eq.s32.totalorder %s110, 0
    %s113 = sadd.s32 %s112, 1
    %s114 = scalar_select %p111, %s112, %s113
    %p117 = pneg %p111
    %p118 = scmp.eq.s32.totalorder %s9, 1
    %p119 = por %p117, %p118
    %p120 = scmp.ne.s32.totalorder %s112, %s115
    %p121 = scmp.eq.s32.totalorder %s9, 0
    %p122 = por %p120, %p121
    %p123 = scmp.ne.s32.totalorder %s112, %s115
    %p124 = scmp.eq.s32.totalorder %s14, 1
    %p125 = por %p123, %p124
    %p126 = scmp.ne.s32.totalorder %s115, %s116
    %p127 = scmp.eq.s32.totalorder %s14, 0
    %p128 = por %p126, %p127
    %p129 = scmp.ne.s32.totalorder %s115, %s116
    %p130 = scmp.eq.s32.totalorder %s15, 1
    %p131 = por %p129, %p130
    %p133 = scmp.ne.s32.totalorder %s116, %s132
    %p134 = scmp.eq.s32.totalorder %s15, 0
    %p135 = por %p133, %p134
    %p136 = scmp.le.s32.totalorder 1, %s9
    %p137 = scmp.lt.s32.totalorder %s9, 3
    %p138 = pnand %p136, %p137
    %p139 = pneg %p138
    // Predicated region
    $region9: #{encoder_forward.1} parent=5 // pred_check
      _
    $region10: #{encoder_forward.1} parent=5 // pred_check_branch
      %141 = sbr.rel (%p138) target = $region12
    $region11: #{encoder_forward.1} parent=5 // pred_region
      %s142 = ssub.s32 %s9, 1
      // Predicated region
      $region13: #{encoder_forward.1} parent=11 // pred_check
        %p143 = pneg %p42
      $region14: #{encoder_forward.1} parent=11 // pred_check_branch
        %145 = sbr.rel (%p143) target = $region16
      $region15: #{encoder_forward.1} parent=11 // pred_region
        _
      $region16: #{encoder_forward.1} parent=11 // pred_fallthru
        _
    $region12: #{encoder_forward.1} parent=5 // pred_fallthru
      _
    %p146 = scmp.lt.s32.totalorder %s9, 2
    // Predicated region
    $region17: #{encoder_forward.1} parent=5 // pred_check
      %p147 = pneg %p146
    $region18: #{encoder_forward.1} parent=5 // pred_check_branch
      %149 = sbr.rel (%p147) target = $region20
    $region19: #{encoder_forward.1} parent=5 // pred_region
      // Predicated region
      $region21: #{encoder_forward.1} parent=19 // pred_check
        %p150 = pneg %p64
      $region22: #{encoder_forward.1} parent=19 // pred_check_branch
        %152 = sbr.rel (%p150) target = $region24
      $region23: #{encoder_forward.1} parent=19 // pred_region
        %p153 = scmp.lt.s32.totalorder %s16, 1
        %s154 = scalar_select %p153, %s16, 1
        %p155 = scmp.lt.s32.totalorder %s17, 1
        %s156 = scalar_select %p155, %s17, 1
        %s157 = smul.addr %s154, 2
        %s158 = sadd.s32 %s156, %s157
        %s159 = smul.addr %s158, 8
        %s160 = scalar_lea.vmem %s1, %s159
      $region24: #{encoder_forward.1} parent=19 // pred_fallthru
        _
      // Predicated region
      $region25: #{encoder_forward.1} parent=19 // pred_check
        %p161 = pneg %p94
      $region26: #{encoder_forward.1} parent=19 // pred_check_branch
        %163 = sbr.rel (%p161) target = $region28
      $region27: #{encoder_forward.1} parent=19 // pred_region
        %s164 = sadd.s32 %s17, 1
        %p165 = scmp.lt.s32.totalorder %s16, 1
        %s166 = scalar_select %p165, %s16, 1
        %p167 = scmp.lt.s32.totalorder %s164, 1
        %s168 = scalar_select %p167, %s164, 1
        %s169 = smul.addr %s166, 2
        %s170 = sadd.s32 %s168, %s169
        %s171 = smul.addr %s170, 8
        %s172 = scalar_lea.vmem %s2, %s171
        %s173 = sadd.s32 %s17, 1
      $region28: #{encoder_forward.1} parent=19 // pred_fallthru
        _
    $region20: #{encoder_forward.1} parent=5 // pred_fallthru
      _
    %p174 = scmp.le.s32.totalorder 1, %s9
    %p175 = scmp.lt.s32.totalorder %s9, 3
    %p176 = pnand %p174, %p175
    %p177 = pneg %p176
    // Predicated region
    $region29: #{encoder_forward.1} parent=5 // pred_check
      _
    $region30: #{encoder_forward.1} parent=5 // pred_check_branch
      %179 = sbr.rel (%p176) target = $region32
    $region31: #{encoder_forward.1} parent=5 // pred_region
      %s180 = ssub.s32 %s9, 1
      %p181 = pneg %p42
      %p182 = pneg %p39
      %p183 = scmp.lt.s32.totalorder %s18, 1
      %s184 = scalar_select %p183, %s18, 1
      %p185 = scmp.lt.s32.totalorder %s19, 1
      %s186 = scalar_select %p185, %s19, 1
      %s187 = smul.addr %s184, 2
      %s188 = sadd.s32 %s186, %s187
      %s189 = smul.addr %s188, 8
      %s190 = scalar_lea.vmem %s1, %s189
      %p191 = pneg %p70
      %p192 = pneg %p67
      %s193 = sadd.s32 %s19, 1
      %p194 = scmp.lt.s32.totalorder %s18, 1
      %s195 = scalar_select %p194, %s18, 1
      %p196 = scmp.lt.s32.totalorder %s193, 1
      %s197 = scalar_select %p196, %s193, 1
      %s198 = smul.addr %s195, 2
      %s199 = sadd.s32 %s197, %s198
      %s200 = smul.addr %s199, 8
      %s201 = scalar_lea.vmem %s2, %s200
      %p202 = pneg %p100
      %p203 = pneg %p97
      %p204 = pneg %p128
      %p205 = pneg %p125
      %p206 = scmp.lt.s32.totalorder %s18, 1
      %s207 = scalar_select %p206, %s18, 1
      %p208 = scmp.lt.s32.totalorder %s19, 0
      %s209 = scalar_select %p208, %s19, 0
      %s210 = smul.addr %s207, 4
      %s211 = sadd.s32 %s209, %s210
      %s212 = smul.addr %s211, 8
      %s213 = scalar_lea.vmem %s3, %s212
      %p214 = scmp.lt.s32.totalorder %s18, 1
      %s215 = scalar_select %p214, %s18, 1
      %p216 = scmp.lt.s32.totalorder %s19, 1
      %s217 = scalar_select %p216, %s19, 1
      %s218 = smul.addr %s215, 2
      %s219 = sadd.s32 %s217, %s218
      %s220 = smul.addr %s219, 8
      %s221 = scalar_lea.vmem %s1, %s220
      %s222 = sadd.s32 %s19, 1
      %p223 = scmp.lt.s32.totalorder %s18, 1
      %s224 = scalar_select %p223, %s18, 1
      %p225 = scmp.lt.s32.totalorder %s222, 1
      %s226 = scalar_select %p225, %s222, 1
      %s227 = smul.addr %s224, 2
      %s228 = sadd.s32 %s226, %s227
      %s229 = smul.addr %s228, 8
      %s230 = scalar_lea.vmem %s2, %s229
      %s231 = sadd.s32 %s19, 1
      %p232 = scmp.lt.s32.totalorder %s18, 1
      %s233 = scalar_select %p232, %s18, 1
      %p234 = scmp.lt.s32.totalorder %s19, 0
      %s235 = scalar_select %p234, %s19, 0
      %s236 = smul.addr %s233, 4
      %s237 = sadd.s32 %s235, %s236
      %s238 = smul.addr %s237, 8
      %s239 = scalar_lea.vmem %s3, %s238
      %v240 = vld [vmem:[%s221] sm:$0xff]
      %v241 = vld [vmem:[%s230] sm:$0xff]
      %244 = vrot.lane.b32.xlu0 %v240, 127
      %v245 = vpop.permute.xlu0 %244
      %246 = vrot.lane.b32.xlu0 %v241, 127
      %v247 = vpop.permute.xlu0 %246
      %vm248 = vcmask 1039360
      %v249 = vsel %vm248, %v245, %v247
      %v251 = vld [vmem:[%s0] sm:$0xff]
      %v252 = vld [vmem:[%s0 + $0x8] sm:$0xff]
      %v253 = vld [vmem:[%s0 + $0x10] sm:$0xff]
      %v254 = vld [vmem:[%s0 + $0x18] sm:$0xff]
      %vm255 = vcmask 130048
      %v257 = vsel %vm255, %v251, 0
      %v260 = vsel %vm255, %v252, 0
      %v263 = vsel %vm255, %v253, 0
      %v266 = vsel %vm255, %v254, 0
      %268 = vmatprep.subr.mxu0 0.0
      %v269 = vand.u32 %v240, 4294901760
      %270 = vmatpush1.msra.mxu0 %v269
      %271 = vmatprep.subr.mxu0 0.0
      %v272 = vand.u32 %v249, 4294901760
      %273 = vmatpush1.msra.mxu0 %v272
      %274 = vmatprep.subr.mxu0 0.0
      %275 = vmatpush1.msra.mxu0 0.0
      %276 = vmatprep.subr.mxu0 0.0
      %277 = vmatpush1.msra.mxu0 0.0
      %278 = vmatprep.subr.mxu0 0.0
      %279 = vmatpush1.msra.mxu0 0.0
      %280 = vmatprep.subr.mxu0 0.0
      %281 = vmatpush1.msra.mxu0 0.0
      %282 = vmatprep.subr.mxu0 0.0
      %283 = vmatpush1.msra.mxu0 0.0
      %284 = vmatprep.subr.mxu0 0.0
      %285 = vmatpush1.msra.mxu0 0.0
      %286 = vmatprep.subr.mxu0 0.0
      %287 = vmatpush1.msra.mxu0 0.0
      %288 = vmatprep.subr.mxu0 0.0
      %289 = vmatpush1.msra.mxu0 0.0
      %290 = vmatprep.subr.mxu0 0.0
      %291 = vmatpush1.msra.mxu0 0.0
      %292 = vmatprep.subr.mxu0 0.0
      %293 = vmatpush1.msra.mxu0 0.0
      %294 = vmatprep.subr.mxu0 0.0
      %295 = vmatpush1.msra.mxu0 0.0
      %296 = vmatprep.subr.mxu0 0.0
      %297 = vmatpush1.msra.mxu0 0.0
      %298 = vmatprep.subr.mxu0 0.0
      %299 = vmatpush1.msra.mxu0 0.0
      %300 = vmatprep.subr.mxu0 0.0
      %301 = vmatpush1.msra.mxu0 0.0
      %302 = vmatprep.subr.mxu0 0.0
      %303 = vmatpush1.msra.mxu0 0.0
      %304 = vmatprep.subr.mxu0 0.0
      %305 = vmatpush1.msra.mxu0 0.0
      %306 = vmatprep.subr.mxu0 0.0
      %307 = vmatpush1.msra.mxu0 0.0
      %308 = vmatprep.subr.mxu0 0.0
      %309 = vmatpush1.msra.mxu0 0.0
      %310 = vmatprep.subr.mxu0 0.0
      %311 = vmatpush1.msra.mxu0 0.0
      %312 = vmatprep.subr.mxu0 0.0
      %313 = vmatpush1.msra.mxu0 0.0
      %314 = vmatprep.subr.mxu0 0.0
      %315 = vmatpush1.msra.mxu0 0.0
      %316 = vmatprep.subr.mxu0 0.0
      %317 = vmatpush1.msra.mxu0 0.0
      %318 = vmatprep.subr.mxu0 0.0
      %319 = vmatpush1.msra.mxu0 0.0
      %320 = vmatprep.subr.mxu0 0.0
      %321 = vmatpush1.msra.mxu0 0.0
      %322 = vmatprep.subr.mxu0 0.0
      %323 = vmatpush1.msra.mxu0 0.0
      %324 = vmatprep.subr.mxu0 0.0
      %325 = vmatpush1.msra.mxu0 0.0
      %326 = vmatprep.subr.mxu0 0.0
      %327 = vmatpush1.msra.mxu0 0.0
      %328 = vmatprep.subr.mxu0 0.0
      %329 = vmatpush1.msra.mxu0 0.0
      %330 = vmatprep.subr.mxu0 0.0
      %331 = vmatpush1.msra.mxu0 0.0
      %332 = vmatprep.subr.mxu0 0.0
      %333 = vmatpush1.msra.mxu0 0.0
      %334 = vmatprep.mubr.f32.mxu0 0.0
      %v335 = vand.u32 %v257, 4294901760
      %v336 = vsub.f32 %v257, %v335
      %v337 = vand.u32 %v336, 4294901760
      %v338 = vsub.f32 %v336, %v337
      %v339 = vand.u32 %v338, 4294901760
      %340 = vmatmul.mubr.f32.gmra.mrb[0].mxu0 %v339
      %v341 = vpop.f32.mrb[0].mxu0
      %v342 = vadd.f32 0.0, %v341
      %v343 = vpop.f32.mrb[0].mxu0
      %344 = vmatprep.mubr.f32.mxu0 0.0
      %v345 = vand.u32 %v260, 4294901760
      %v346 = vsub.f32 %v260, %v345
      %v347 = vand.u32 %v346, 4294901760
      %v348 = vsub.f32 %v346, %v347
      %v349 = vand.u32 %v348, 4294901760
      %350 = vmatmul.mubr.f32.gmra.mrb[0].mxu0 %v349
      %v351 = vpop.f32.mrb[0].mxu0
      %v352 = vadd.f32 0.0, %v351
      %v353 = vpop.f32.mrb[0].mxu0
      %354 = vmatprep.mubr.f32.mxu0 0.0
      %v355 = vand.u32 %v263, 4294901760
      %v356 = vsub.f32 %v263, %v355
      %v357 = vand.u32 %v356, 4294901760
      %v358 = vsub.f32 %v356, %v357
      %v359 = vand.u32 %v358, 4294901760
      %360 = vmatmul.mubr.f32.gmra.mrb[0].mxu0 %v359
      %v361 = vpop.f32.mrb[0].mxu0
      %v362 = vadd.f32 0.0, %v361
      %v363 = vpop.f32.mrb[0].mxu0
      %364 = vmatprep.mubr.f32.mxu0 0.0
      %v365 = vand.u32 %v266, 4294901760
      %v366 = vsub.f32 %v266, %v365
      %v367 = vand.u32 %v366, 4294901760
      %v368 = vsub.f32 %v366, %v367
      %v369 = vand.u32 %v368, 4294901760
      %370 = vmatmul.mubr.f32.gmra.mrb[0].mxu0 %v369
      %v371 = vpop.f32.mrb[0].mxu0
      %v372 = vadd.f32 0.0, %v371
      %v373 = vpop.f32.mrb[0].mxu0
      %374 = vdwg.mxu0
      %375 = vmatprep.subr.mxu0 0.0
      %v376 = vand.u32 %v240, 4294901760
      %v377 = vsub.f32 %v240, %v376
      %v378 = vand.u32 %v377, 4294901760
      %v379 = vsub.f32 %v377, %v378
      %v380 = vand.u32 %v379, 4294901760
      %381 = vmatpush1.msra.mxu0 %v380
      %382 = vmatprep.subr.mxu0 0.0
      %v383 = vand.u32 %v249, 4294901760
      %v384 = vsub.f32 %v249, %v383
      %v385 = vand.u32 %v384, 4294901760
      %v386 = vsub.f32 %v384, %v385
      %v387 = vand.u32 %v386, 4294901760
      %388 = vmatpush1.msra.mxu0 %v387
      %389 = vmatprep.subr.mxu0 0.0
      %390 = vmatpush1.msra.mxu0 0.0
      %391 = vmatprep.subr.mxu0 0.0
      %392 = vmatpush1.msra.mxu0 0.0
      %393 = vmatprep.subr.mxu0 0.0
      %394 = vmatpush1.msra.mxu0 0.0
      %395 = vmatprep.subr.mxu0 0.0
      %396 = vmatpush1.msra.mxu0 0.0
      %397 = vmatprep.subr.mxu0 0.0
      %398 = vmatpush1.msra.mxu0 0.0
      %399 = vmatprep.subr.mxu0 0.0
      %400 = vmatpush1.msra.mxu0 0.0
      %401 = vmatprep.subr.mxu0 0.0
      %402 = vmatpush1.msra.mxu0 0.0
      %403 = vmatprep.subr.mxu0 0.0
      %404 = vmatpush1.msra.mxu0 0.0
      %405 = vmatprep.subr.mxu0 0.0
      %406 = vmatpush1.msra.mxu0 0.0
      %407 = vmatprep.subr.mxu0 0.0
      %408 = vmatpush1.msra.mxu0 0.0
      %409 = vmatprep.subr.mxu0 0.0
      %410 = vmatpush1.msra.mxu0 0.0
      %411 = vmatprep.subr.mxu0 0.0
      %412 = vmatpush1.msra.mxu0 0.0
      %413 = vmatprep.subr.mxu0 0.0
      %414 = vmatpush1.msra.mxu0 0.0
      %415 = vmatprep.subr.mxu0 0.0
      %416 = vmatpush1.msra.mxu0 0.0
      %417 = vmatprep.subr.mxu0 0.0
      %418 = vmatpush1.msra.mxu0 0.0
      %419 = vmatprep.subr.mxu0 0.0
      %420 = vmatpush1.msra.mxu0 0.0
      %421 = vmatprep.subr.mxu0 0.0
      %422 = vmatpush1.msra.mxu0 0.0
      %423 = vmatprep.subr.mxu0 0.0
      %424 = vmatpush1.msra.mxu0 0.0
      %425 = vmatprep.subr.mxu0 0.0
      %426 = vmatpush1.msra.mxu0 0.0
      %427 = vmatprep.subr.mxu0 0.0
      %428 = vmatpush1.msra.mxu0 0.0
      %429 = vmatprep.subr.mxu0 0.0
      %430 = vmatpush1.msra.mxu0 0.0
      %431 = vmatprep.subr.mxu0 0.0
      %432 = vmatpush1.msra.mxu0 0.0
      %433 = vmatprep.subr.mxu0 0.0
      %434 = vmatpush1.msra.mxu0 0.0
      %435 = vmatprep.subr.mxu0 0.0
      %436 = vmatpush1.msra.mxu0 0.0
      %437 = vmatprep.subr.mxu0 0.0
      %438 = vmatpush1.msra.mxu0 0.0
      %439 = vmatprep.subr.mxu0 0.0
      %440 = vmatpush1.msra.mxu0 0.0
      %441 = vmatprep.subr.mxu0 0.0
      %442 = vmatpush1.msra.mxu0 0.0
      %443 = vmatprep.subr.mxu0 0.0
      %444 = vmatpush1.msra.mxu0 0.0
      %445 = vmatprep.subr.mxu0 0.0
      %446 = vmatpush1.msra.mxu0 0.0
      %447 = vmatprep.subr.mxu0 0.0
      %448 = vmatpush1.msra.mxu0 0.0
      %449 = vmatprep.mubr.f32.mxu0 0.0
      %v450 = vand.u32 %v257, 4294901760
      %451 = vmatmul.mubr.f32.gmra.mrb[0].mxu0 %v450
      %v452 = vpop.f32.mrb[0].mxu0
      %v453 = vadd.f32 %v342, %v452
      %v454 = vpop.f32.mrb[0].mxu0
      %455 = vmatprep.mubr.f32.mxu0 0.0
      %v456 = vand.u32 %v260, 4294901760
      %457 = vmatmul.mubr.f32.gmra.mrb[0].mxu0 %v456
      %v458 = vpop.f32.mrb[0].mxu0
      %v459 = vadd.f32 %v352, %v458
      %v460 = vpop.f32.mrb[0].mxu0
      %461 = vmatprep.mubr.f32.mxu0 0.0
      %v462 = vand.u32 %v263, 4294901760
      %463 = vmatmul.mubr.f32.gmra.mrb[0].mxu0 %v462
      %v464 = vpop.f32.mrb[0].mxu0
      %v465 = vadd.f32 %v362, %v464
      %v466 = vpop.f32.mrb[0].mxu0
      %467 = vmatprep.mubr.f32.mxu0 0.0
      %v468 = vand.u32 %v266, 4294901760
      %469 = vmatmul.mubr.f32.gmra.mrb[0].mxu0 %v468
      %v470 = vpop.f32.mrb[0].mxu0
      %v471 = vadd.f32 %v372, %v470
      %v472 = vpop.f32.mrb[0].mxu0
      %473 = vdwg.mxu0
      %474 = vmatprep.subr.mxu0 0.0
      %v475 = vand.u32 %v240, 4294901760
      %v476 = vsub.f32 %v240, %v475
      %477 = vmatpush1.msra.mxu0 %v476
      %478 = vmatprep.subr.mxu0 0.0
      %v479 = vand.u32 %v249, 4294901760
      %v480 = vsub.f32 %v249, %v479
      %481 = vmatpush1.msra.mxu0 %v480
      %482 = vmatprep.subr.mxu0 0.0
      %483 = vmatpush1.msra.mxu0 0.0
      %484 = vmatprep.subr.mxu0 0.0
      %485 = vmatpush1.msra.mxu0 0.0
      %486 = vmatprep.subr.mxu0 0.0
      %487 = vmatpush1.msra.mxu0 0.0
      %488 = vmatprep.subr.mxu0 0.0
      %489 = vmatpush1.msra.mxu0 0.0
      %490 = vmatprep.subr.mxu0 0.0
      %491 = vmatpush1.msra.mxu0 0.0
      %492 = vmatprep.subr.mxu0 0.0
      %493 = vmatpush1.msra.mxu0 0.0
      %494 = vmatprep.subr.mxu0 0.0
      %495 = vmatpush1.msra.mxu0 0.0
      %496 = vmatprep.subr.mxu0 0.0
      %497 = vmatpush1.msra.mxu0 0.0
      %498 = vmatprep.subr.mxu0 0.0
      %499 = vmatpush1.msra.mxu0 0.0
      %500 = vmatprep.subr.mxu0 0.0
      %501 = vmatpush1.msra.mxu0 0.0
      %502 = vmatprep.subr.mxu0 0.0
      %503 = vmatpush1.msra.mxu0 0.0
      %504 = vmatprep.subr.mxu0 0.0
      %505 = vmatpush1.msra.mxu0 0.0
      %506 = vmatprep.subr.mxu0 0.0
      %507 = vmatpush1.msra.mxu0 0.0
      %508 = vmatprep.subr.mxu0 0.0
      %509 = vmatpush1.msra.mxu0 0.0
      %510 = vmatprep.subr.mxu0 0.0
      %511 = vmatpush1.msra.mxu0 0.0
      %512 = vmatprep.subr.mxu0 0.0
      %513 = vmatpush1.msra.mxu0 0.0
      %514 = vmatprep.subr.mxu0 0.0
      %515 = vmatpush1.msra.mxu0 0.0
      %516 = vmatprep.subr.mxu0 0.0
      %517 = vmatpush1.msra.mxu0 0.0
      %518 = vmatprep.subr.mxu0 0.0
      %519 = vmatpush1.msra.mxu0 0.0
      %520 = vmatprep.subr.mxu0 0.0
      %521 = vmatpush1.msra.mxu0 0.0
      %522 = vmatprep.subr.mxu0 0.0
      %523 = vmatpush1.msra.mxu0 0.0
      %524 = vmatprep.subr.mxu0 0.0
      %525 = vmatpush1.msra.mxu0 0.0
      %526 = vmatprep.subr.mxu0 0.0
      %527 = vmatpush1.msra.mxu0 0.0
      %528 = vmatprep.subr.mxu0 0.0
      %529 = vmatpush1.msra.mxu0 0.0
      %530 = vmatprep.subr.mxu0 0.0
      %531 = vmatpush1.msra.mxu0 0.0
      %532 = vmatprep.subr.mxu0 0.0
      %533 = vmatpush1.msra.mxu0 0.0
      %534 = vmatprep.subr.mxu0 0.0
      %535 = vmatpush1.msra.mxu0 0.0
      %536 = vmatprep.subr.mxu0 0.0
      %537 = vmatpush1.msra.mxu0 0.0
      %538 = vmatprep.subr.mxu0 0.0
      %539 = vmatpush1.msra.mxu0 0.0
      %540 = vmatprep.subr.mxu0 0.0
      %541 = vmatpush1.msra.mxu0 0.0
      %542 = vmatprep.mubr.f32.mxu0 0.0
      %v543 = vand.u32 %v257, 4294901760
      %v544 = vsub.f32 %v257, %v543
      %545 = vmatmul.mubr.f32.gmra.mrb[0].mxu0 %v544
      %v546 = vpop.f32.mrb[0].mxu0
      %v547 = vadd.f32 %v453, %v546
      %v548 = vpop.f32.mrb[0].mxu0
      %549 = vmatprep.mubr.f32.mxu0 0.0
      %v550 = vand.u32 %v260, 4294901760
      %v551 = vsub.f32 %v260, %v550
      %552 = vmatmul.mubr.f32.gmra.mrb[0].mxu0 %v551
      %v553 = vpop.f32.mrb[0].mxu0
      %v554 = vadd.f32 %v459, %v553
      %v555 = vpop.f32.mrb[0].mxu0
      %556 = vmatprep.mubr.f32.mxu0 0.0
      %v557 = vand.u32 %v263, 4294901760
      %v558 = vsub.f32 %v263, %v557
      %559 = vmatmul.mubr.f32.gmra.mrb[0].mxu0 %v558
      %v560 = vpop.f32.mrb[0].mxu0
      %v561 = vadd.f32 %v465, %v560
      %v562 = vpop.f32.mrb[0].mxu0
      %563 = vmatprep.mubr.f32.mxu0 0.0
      %v564 = vand.u32 %v266, 4294901760
      %v565 = vsub.f32 %v266, %v564
      %566 = vmatmul.mubr.f32.gmra.mrb[0].mxu0 %v565
      %v567 = vpop.f32.mrb[0].mxu0
      %v568 = vadd.f32 %v471, %v567
      %v569 = vpop.f32.mrb[0].mxu0
      %570 = vdwg.mxu0
      %571 = vmatprep.subr.mxu0 0.0
      %v572 = vand.u32 %v240, 4294901760
      %573 = vmatpush1.msra.mxu0 %v572
      %574 = vmatprep.subr.mxu0 0.0
      %v575 = vand.u32 %v249, 4294901760
      %576 = vmatpush1.msra.mxu0 %v575
      %577 = vmatprep.subr.mxu0 0.0
      %578 = vmatpush1.msra.mxu0 0.0
      %579 = vmatprep.subr.mxu0 0.0
      %580 = vmatpush1.msra.mxu0 0.0
      %581 = vmatprep.subr.mxu0 0.0
      %582 = vmatpush1.msra.mxu0 0.0
      %583 = vmatprep.subr.mxu0 0.0
      %584 = vmatpush1.msra.mxu0 0.0
      %585 = vmatprep.subr.mxu0 0.0
      %586 = vmatpush1.msra.mxu0 0.0
      %587 = vmatprep.subr.mxu0 0.0
      %588 = vmatpush1.msra.mxu0 0.0
      %589 = vmatprep.subr.mxu0 0.0
      %590 = vmatpush1.msra.mxu0 0.0
      %591 = vmatprep.subr.mxu0 0.0
      %592 = vmatpush1.msra.mxu0 0.0
      %593 = vmatprep.subr.mxu0 0.0
      %594 = vmatpush1.msra.mxu0 0.0
      %595 = vmatprep.subr.mxu0 0.0
      %596 = vmatpush1.msra.mxu0 0.0
      %597 = vmatprep.subr.mxu0 0.0
      %598 = vmatpush1.msra.mxu0 0.0
      %599 = vmatprep.subr.mxu0 0.0
      %600 = vmatpush1.msra.mxu0 0.0
      %601 = vmatprep.subr.mxu0 0.0
      %602 = vmatpush1.msra.mxu0 0.0
      %603 = vmatprep.subr.mxu0 0.0
      %604 = vmatpush1.msra.mxu0 0.0
      %605 = vmatprep.subr.mxu0 0.0
      %606 = vmatpush1.msra.mxu0 0.0
      %607 = vmatprep.subr.mxu0 0.0
      %608 = vmatpush1.msra.mxu0 0.0
      %609 = vmatprep.subr.mxu0 0.0
      %610 = vmatpush1.msra.mxu0 0.0
      %611 = vmatprep.subr.mxu0 0.0
      %612 = vmatpush1.msra.mxu0 0.0
      %613 = vmatprep.subr.mxu0 0.0
      %614 = vmatpush1.msra.mxu0 0.0
      %615 = vmatprep.subr.mxu0 0.0
      %616 = vmatpush1.msra.mxu0 0.0
      %617 = vmatprep.subr.mxu0 0.0
      %618 = vmatpush1.msra.mxu0 0.0
      %619 = vmatprep.subr.mxu0 0.0
      %620 = vmatpush1.msra.mxu0 0.0
      %621 = vmatprep.subr.mxu0 0.0
      %622 = vmatpush1.msra.mxu0 0.0
      %623 = vmatprep.subr.mxu0 0.0
      %624 = vmatpush1.msra.mxu0 0.0
      %625 = vmatprep.subr.mxu0 0.0
      %626 = vmatpush1.msra.mxu0 0.0
      %627 = vmatprep.subr.mxu0 0.0
      %628 = vmatpush1.msra.mxu0 0.0
      %629 = vmatprep.subr.mxu0 0.0
      %630 = vmatpush1.msra.mxu0 0.0
      %631 = vmatprep.subr.mxu0 0.0
      %632 = vmatpush1.msra.mxu0 0.0
      %633 = vmatprep.subr.mxu0 0.0
      %634 = vmatpush1.msra.mxu0 0.0
      %635 = vmatprep.subr.mxu0 0.0
      %636 = vmatpush1.msra.mxu0 0.0
      %637 = vmatprep.mubr.f32.mxu0 0.0
      %v638 = vand.u32 %v257, 4294901760
      %v639 = vsub.f32 %v257, %v638
      %v640 = vand.u32 %v639, 4294901760
      %641 = vmatmul.mubr.f32.gmra.mrb[0].mxu0 %v640
      %v642 = vpop.f32.mrb[0].mxu0
      %v643 = vadd.f32 %v547, %v642
      %v644 = vpop.f32.mrb[0].mxu0
      %645 = vmatprep.mubr.f32.mxu0 0.0
      %v646 = vand.u32 %v260, 4294901760
      %v647 = vsub.f32 %v260, %v646
      %v648 = vand.u32 %v647, 4294901760
      %649 = vmatmul.mubr.f32.gmra.mrb[0].mxu0 %v648
      %v650 = vpop.f32.mrb[0].mxu0
      %v651 = vadd.f32 %v554, %v650
      %v652 = vpop.f32.mrb[0].mxu0
      %653 = vmatprep.mubr.f32.mxu0 0.0
      %v654 = vand.u32 %v263, 4294901760
      %v655 = vsub.f32 %v263, %v654
      %v656 = vand.u32 %v655, 4294901760
      %657 = vmatmul.mubr.f32.gmra.mrb[0].mxu0 %v656
      %v658 = vpop.f32.mrb[0].mxu0
      %v659 = vadd.f32 %v561, %v658
      %v660 = vpop.f32.mrb[0].mxu0
      %661 = vmatprep.mubr.f32.mxu0 0.0
      %v662 = vand.u32 %v266, 4294901760
      %v663 = vsub.f32 %v266, %v662
      %v664 = vand.u32 %v663, 4294901760
      %665 = vmatmul.mubr.f32.gmra.mrb[0].mxu0 %v664
      %v666 = vpop.f32.mrb[0].mxu0
      %v667 = vadd.f32 %v568, %v666
      %v668 = vpop.f32.mrb[0].mxu0
      %669 = vdwg.mxu0
      %670 = vmatprep.subr.mxu0 0.0
      %v671 = vand.u32 %v240, 4294901760
      %v672 = vsub.f32 %v240, %v671
      %v673 = vand.u32 %v672, 4294901760
      %674 = vmatpush1.msra.mxu0 %v673
      %675 = vmatprep.subr.mxu0 0.0
      %v676 = vand.u32 %v249, 4294901760
      %v677 = vsub.f32 %v249, %v676
      %v678 = vand.u32 %v677, 4294901760
      %679 = vmatpush1.msra.mxu0 %v678
      %680 = vmatprep.subr.mxu0 0.0
      %681 = vmatpush1.msra.mxu0 0.0
      %682 = vmatprep.subr.mxu0 0.0
      %683 = vmatpush1.msra.mxu0 0.0
      %684 = vmatprep.subr.mxu0 0.0
      %685 = vmatpush1.msra.mxu0 0.0
      %686 = vmatprep.subr.mxu0 0.0
      %687 = vmatpush1.msra.mxu0 0.0
      %688 = vmatprep.subr.mxu0 0.0
      %689 = vmatpush1.msra.mxu0 0.0
      %690 = vmatprep.subr.mxu0 0.0
      %691 = vmatpush1.msra.mxu0 0.0
      %692 = vmatprep.subr.mxu0 0.0
      %693 = vmatpush1.msra.mxu0 0.0
      %694 = vmatprep.subr.mxu0 0.0
      %695 = vmatpush1.msra.mxu0 0.0
      %696 = vmatprep.subr.mxu0 0.0
      %697 = vmatpush1.msra.mxu0 0.0
      %698 = vmatprep.subr.mxu0 0.0
      %699 = vmatpush1.msra.mxu0 0.0
      %700 = vmatprep.subr.mxu0 0.0
      %701 = vmatpush1.msra.mxu0 0.0
      %702 = vmatprep.subr.mxu0 0.0
      %703 = vmatpush1.msra.mxu0 0.0
      %704 = vmatprep.subr.mxu0 0.0
      %705 = vmatpush1.msra.mxu0 0.0
      %706 = vmatprep.subr.mxu0 0.0
      %707 = vmatpush1.msra.mxu0 0.0
      %708 = vmatprep.subr.mxu0 0.0
      %709 = vmatpush1.msra.mxu0 0.0
      %710 = vmatprep.subr.mxu0 0.0
      %711 = vmatpush1.msra.mxu0 0.0
      %712 = vmatprep.subr.mxu0 0.0
      %713 = vmatpush1.msra.mxu0 0.0
      %714 = vmatprep.subr.mxu0 0.0
      %715 = vmatpush1.msra.mxu0 0.0
      %716 = vmatprep.subr.mxu0 0.0
      %717 = vmatpush1.msra.mxu0 0.0
      %718 = vmatprep.subr.mxu0 0.0
      %719 = vmatpush1.msra.mxu0 0.0
      %720 = vmatprep.subr.mxu0 0.0
      %721 = vmatpush1.msra.mxu0 0.0
      %722 = vmatprep.subr.mxu0 0.0
      %723 = vmatpush1.msra.mxu0 0.0
      %724 = vmatprep.subr.mxu0 0.0
      %725 = vmatpush1.msra.mxu0 0.0
      %726 = vmatprep.subr.mxu0 0.0
      %727 = vmatpush1.msra.mxu0 0.0
      %728 = vmatprep.subr.mxu0 0.0
      %729 = vmatpush1.msra.mxu0 0.0
      %730 = vmatprep.subr.mxu0 0.0
      %731 = vmatpush1.msra.mxu0 0.0
      %732 = vmatprep.subr.mxu0 0.0
      %733 = vmatpush1.msra.mxu0 0.0
      %734 = vmatprep.subr.mxu0 0.0
      %735 = vmatpush1.msra.mxu0 0.0
      %736 = vmatprep.subr.mxu0 0.0
      %737 = vmatpush1.msra.mxu0 0.0
      %738 = vmatprep.subr.mxu0 0.0
      %739 = vmatpush1.msra.mxu0 0.0
      %740 = vmatprep.mubr.f32.mxu0 0.0
      %v741 = vand.u32 %v257, 4294901760
      %742 = vmatmul.mubr.f32.gmra.mrb[0].mxu0 %v741
      %v743 = vpop.f32.mrb[0].mxu0
      %v744 = vadd.f32 %v643, %v743
      %v745 = vpop.f32.mrb[0].mxu0
      %746 = vmatprep.mubr.f32.mxu0 0.0
      %v747 = vand.u32 %v260, 4294901760
      %748 = vmatmul.mubr.f32.gmra.mrb[0].mxu0 %v747
      %v749 = vpop.f32.mrb[0].mxu0
      %v750 = vadd.f32 %v651, %v749
      %v751 = vpop.f32.mrb[0].mxu0
      %752 = vmatprep.mubr.f32.mxu0 0.0
      %v753 = vand.u32 %v263, 4294901760
      %754 = vmatmul.mubr.f32.gmra.mrb[0].mxu0 %v753
      %v755 = vpop.f32.mrb[0].mxu0
      %v756 = vadd.f32 %v659, %v755
      %v757 = vpop.f32.mrb[0].mxu0
      %758 = vmatprep.mubr.f32.mxu0 0.0
      %v759 = vand.u32 %v266, 4294901760
      %760 = vmatmul.mubr.f32.gmra.mrb[0].mxu0 %v759
      %v761 = vpop.f32.mrb[0].mxu0
      %v762 = vadd.f32 %v667, %v761
      %v763 = vpop.f32.mrb[0].mxu0
      %764 = vdwg.mxu0
      %765 = vmatprep.subr.mxu0 0.0
      %v766 = vand.u32 %v240, 4294901760
      %767 = vmatpush1.msra.mxu0 %v766
      %768 = vmatprep.subr.mxu0 0.0
      %v769 = vand.u32 %v249, 4294901760
      %770 = vmatpush1.msra.mxu0 %v769
      %771 = vmatprep.subr.mxu0 0.0
      %772 = vmatpush1.msra.mxu0 0.0
      %773 = vmatprep.subr.mxu0 0.0
      %774 = vmatpush1.msra.mxu0 0.0
      %775 = vmatprep.subr.mxu0 0.0
      %776 = vmatpush1.msra.mxu0 0.0
      %777 = vmatprep.subr.mxu0 0.0
      %778 = vmatpush1.msra.mxu0 0.0
      %779 = vmatprep.subr.mxu0 0.0
      %780 = vmatpush1.msra.mxu0 0.0
      %781 = vmatprep.subr.mxu0 0.0
      %782 = vmatpush1.msra.mxu0 0.0
      %783 = vmatprep.subr.mxu0 0.0
      %784 = vmatpush1.msra.mxu0 0.0
      %785 = vmatprep.subr.mxu0 0.0
      %786 = vmatpush1.msra.mxu0 0.0
      %787 = vmatprep.subr.mxu0 0.0
      %788 = vmatpush1.msra.mxu0 0.0
      %789 = vmatprep.subr.mxu0 0.0
      %790 = vmatpush1.msra.mxu0 0.0
      %791 = vmatprep.subr.mxu0 0.0
      %792 = vmatpush1.msra.mxu0 0.0
      %793 = vmatprep.subr.mxu0 0.0
      %794 = vmatpush1.msra.mxu0 0.0
      %795 = vmatprep.subr.mxu0 0.0
      %796 = vmatpush1.msra.mxu0 0.0
      %797 = vmatprep.subr.mxu0 0.0
      %798 = vmatpush1.msra.mxu0 0.0
      %799 = vmatprep.subr.mxu0 0.0
      %800 = vmatpush1.msra.mxu0 0.0
      %801 = vmatprep.subr.mxu0 0.0
      %802 = vmatpush1.msra.mxu0 0.0
      %803 = vmatprep.subr.mxu0 0.0
      %804 = vmatpush1.msra.mxu0 0.0
      %805 = vmatprep.subr.mxu0 0.0
      %806 = vmatpush1.msra.mxu0 0.0
      %807 = vmatprep.subr.mxu0 0.0
      %808 = vmatpush1.msra.mxu0 0.0
      %809 = vmatprep.subr.mxu0 0.0
      %810 = vmatpush1.msra.mxu0 0.0
      %811 = vmatprep.subr.mxu0 0.0
      %812 = vmatpush1.msra.mxu0 0.0
      %813 = vmatprep.subr.mxu0 0.0
      %814 = vmatpush1.msra.mxu0 0.0
      %815 = vmatprep.subr.mxu0 0.0
      %816 = vmatpush1.msra.mxu0 0.0
      %817 = vmatprep.subr.mxu0 0.0
      %818 = vmatpush1.msra.mxu0 0.0
      %819 = vmatprep.subr.mxu0 0.0
      %820 = vmatpush1.msra.mxu0 0.0
      %821 = vmatprep.subr.mxu0 0.0
      %822 = vmatpush1.msra.mxu0 0.0
      %823 = vmatprep.subr.mxu0 0.0
      %824 = vmatpush1.msra.mxu0 0.0
      %825 = vmatprep.subr.mxu0 0.0
      %826 = vmatpush1.msra.mxu0 0.0
      %827 = vmatprep.subr.mxu0 0.0
      %828 = vmatpush1.msra.mxu0 0.0
      %829 = vmatprep.subr.mxu0 0.0
      %830 = vmatpush1.msra.mxu0 0.0
      %831 = vmatprep.mubr.f32.mxu0 0.0
      %v832 = vand.u32 %v257, 4294901760
      %833 = vmatmul.mubr.f32.gmra.mrb[0].mxu0 %v832
      %v834 = vpop.f32.mrb[0].mxu0
      %v835 = vadd.f32 %v744, %v834
      %v836 = vpop.f32.mrb[0].mxu0
      %837 = vmatprep.mubr.f32.mxu0 0.0
      %v838 = vand.u32 %v260, 4294901760
      %839 = vmatmul.mubr.f32.gmra.mrb[0].mxu0 %v838
      %v840 = vpop.f32.mrb[0].mxu0
      %v841 = vadd.f32 %v750, %v840
      %v842 = vpop.f32.mrb[0].mxu0
      %843 = vmatprep.mubr.f32.mxu0 0.0
      %v844 = vand.u32 %v263, 4294901760
      %845 = vmatmul.mubr.f32.gmra.mrb[0].mxu0 %v844
      %v846 = vpop.f32.mrb[0].mxu0
      %v847 = vadd.f32 %v756, %v846
      %v848 = vpop.f32.mrb[0].mxu0
      %849 = vmatprep.mubr.f32.mxu0 0.0
      %v850 = vand.u32 %v266, 4294901760
      %851 = vmatmul.mubr.f32.gmra.mrb[0].mxu0 %v850
      %v852 = vpop.f32.mrb[0].mxu0
      %v853 = vadd.f32 %v762, %v852
      %v854 = vpop.f32.mrb[0].mxu0
      %855 = vdwg.mxu0
      %v856 = vmax.f32 %v835, 0.0
      %v857 = vmax.f32 %v841, 0.0
      %v858 = vmax.f32 %v847, 0.0
      %v859 = vmax.f32 %v853, 0.0
      %860 = vst [vmem:[%s239] sm:$0xff] %v856
      %861 = vst [vmem:[%s239 + $0x8] sm:$0xff] %v857
      %862 = vst [vmem:[%s239 + $0x10] sm:$0xff] %v858
      %863 = vst [vmem:[%s239 + $0x18] sm:$0xff] %v859
      %p864 = scmp.lt.s32.totalorder %s18, 1
      %s865 = scalar_select %p864, %s18, 1
      %p866 = scmp.lt.s32.totalorder %s19, 0
      %s867 = scalar_select %p866, %s19, 0
      %s868 = smul.addr %s865, 4
      %s869 = sadd.s32 %s867, %s868
      %s870 = smul.addr %s869, 8
      %s871 = scalar_lea.vmem %s3, %s870
      // Predicated region
      $region33: #{encoder_forward.1} parent=31 // pred_check
        %p872 = pneg %p125
      $region34: #{encoder_forward.1} parent=31 // pred_check_branch
        %874 = sbr.rel (%p872) target = $region36
      $region35: #{encoder_forward.1} parent=31 // pred_region
        _
      $region36: #{encoder_forward.1} parent=31 // pred_fallthru
        _
    $region32: #{encoder_forward.1} parent=5 // pred_fallthru
      _
    %p875 = scmp.le.s32.totalorder 2, %s9
    // Predicated region
    $region37: #{encoder_forward.1} parent=5 // pred_check
      %p876 = pneg %p875
    $region38: #{encoder_forward.1} parent=5 // pred_check_branch
      %878 = sbr.rel (%p876) target = $region40
    $region39: #{encoder_forward.1} parent=5 // pred_region
      %s879 = ssub.s32 %s9, 2
      // Predicated region
      $region41: #{encoder_forward.1} parent=39 // pred_check
        %p880 = pneg %p131
      $region42: #{encoder_forward.1} parent=39 // pred_check_branch
        %882 = sbr.rel (%p880) target = $region44
      $region43: #{encoder_forward.1} parent=39 // pred_region
        %p883 = scmp.lt.s32.totalorder %s20, 1
        %s884 = scalar_select %p883, %s20, 1
        %p885 = scmp.lt.s32.totalorder %s21, 0
        %s886 = scalar_select %p885, %s21, 0
        %s887 = smul.addr %s884, 4
        %s888 = sadd.s32 %s886, %s887
        %s889 = smul.addr %s888, 8
        %s890 = scalar_lea.vmem %s3, %s889
      $region44: #{encoder_forward.1} parent=39 // pred_fallthru
        _
    $region40: #{encoder_forward.1} parent=5 // pred_fallthru
      _
  $region6: #{encoder_forward.1} parent=0 // loop_footer
    %s13 = sadd.s32 1, %s9
  $region7: #{encoder_forward.1} parent=0 // loop_footer_branch
    %8 = sbr.rel target = $region3
  $region8: #{encoder_forward.1} parent=0 // loop_exit
    _

</llo_original>
